<compile_context>
chip_gen: v5e
topology: v5e:2x2
jax: 0.10.0
libtpu: 0.0.40
codegen_flags: <defaults>
</compile_context>

<pallas_src>
import numpy as np
import jax
import jax.numpy as jnp
from jax.experimental import pallas as pl

B = 2          # batch
N_MELS = 8     # mel channels
T_SPEC = 4     # spectrogram frames
UP = 16        # time upsampling factor per stage (stride[1])
KW = 32        # time kernel width
LEAK = 0.4     # leaky_relu negative slope


# ------------------------------- Pallas kernel --------------------------------
def _upsampler_kernel(x_ref, s_ref, a1_ref, a2_ref, b1_ref, b2_ref, o_ref):
    """Fused 2-stage spectrogram upsampler; whole problem resident in VMEM."""
    s_up = s_ref[0]   # selects input row m+1 (mel tap kh=0), block-diag over batch
    s_dn = s_ref[1]   # selects input row m-1 (mel tap kh=2)

    def stage(u, a_ref, bias):
        # ConvTranspose2d(1,1,[3,32],stride=[1,16],pad=[1,8]) == sum_kh S_kh @ u @ A_kh + b
        y = (jnp.dot(jnp.dot(s_up, u, preferred_element_type=jnp.float32),
                     a_ref[0], preferred_element_type=jnp.float32)
             + jnp.dot(u, a_ref[1], preferred_element_type=jnp.float32)   # kh=1: S == I
             + jnp.dot(jnp.dot(s_dn, u, preferred_element_type=jnp.float32),
                       a_ref[2], preferred_element_type=jnp.float32)
             + bias)
        return jnp.where(y >= 0.0, y, LEAK * y)          # leaky_relu(0.4)

    h = stage(x_ref[...], a1_ref, b1_ref[...])           # [B*M, 16*T]  (VMEM only)
    o_ref[...] = stage(h, a2_ref, b2_ref[...])           # [B*M, 256*T]


def spectrogram_upsampler(x, params):
    """x: [B, M, T] float32 -> [B, M, 256*T] float32."""
    Bb, M, T = x.shape
    L = UP * UP * T
    x2d = x.reshape(Bb * M, T)                           # fold batch into sublanes
    out2d = pl.pallas_call(
        _upsampler_kernel,
        out_shape=jax.ShapeDtypeStruct((Bb * M, L), jnp.float32),
        # No grid: the entire working set (<1 MiB) lives in VMEM as one block.
        # TODO(synk): on v7x a size-2 "parallel" grid axis over batch could use the
        # second TensorCore, but this kernel is launch-latency bound either way.
    )(x2d, params['S'], params['A1'], params['A2'], params['b1'], params['b2'])
    return out2d.reshape(Bb, M, L)


# --------------------------- host-side factorization ---------------------------
def _time_expand_matrices(w, t_in):
    # A[kh, j, ow] = W[kh, ow + 8 - 16*j] when that kernel index is in [0, 32).
    W = np.asarray(w)[0, 0]                              # [3, 32]
    j = np.arange(t_in)[:, None]                         # [t_in, 1]
    ow = np.arange(UP * t_in)[None, :]                   # [1, 16*t_in]
    kw = ow + 8 - UP * j                                 # padding[1] = 8, stride[1] = 16
    valid = (kw >= 0) & (kw < KW)
    kw_c = np.clip(kw, 0, KW - 1)
    return np.where(valid[None], W[:, kw_c], 0.0).astype(np.float32)   # [3, t_in, 16*t_in]


def _mel_shift_matrices(b, m):
    # S[0]: output row oh takes input row oh+1 (kh=0); S[1]: row oh-1 (kh=2).
    # Block-diagonal over batch so flattened batches never mix.
    S = np.zeros((2, b * m, b * m), np.float32)
    for bi in range(b):
        for oh in range(m):
            if oh + 1 < m:
                S[0, bi * m + oh, bi * m + oh + 1] = 1.0
            if oh - 1 >= 0:
                S[1, bi * m + oh, bi * m + oh - 1] = 1.0
    return S


def build_params(rng, b, m, t):
    bound = float(np.sqrt(1.0 / (3 * KW)))               # PyTorch-style uniform init
    w1 = rng.uniform(-bound, bound, size=(1, 1, 3, KW)).astype(np.float32)
    w2 = rng.uniform(-bound, bound, size=(1, 1, 3, KW)).astype(np.float32)
    b1 = rng.uniform(-bound, bound, size=(1,)).astype(np.float32)
    b2 = rng.uniform(-bound, bound, size=(1,)).astype(np.float32)
    raw = dict(w1=w1, b1=b1, w2=w2, b2=b2)
    dev = dict(
        S=jnp.asarray(_mel_shift_matrices(b, m)),
        A1=jnp.asarray(_time_expand_matrices(w1, t)),          # [3, T, 16*T]
        A2=jnp.asarray(_time_expand_matrices(w2, UP * t)),     # [3, 16*T, 256*T]
        b1=jnp.asarray(b1.reshape(1, 1)),
        b2=jnp.asarray(b2.reshape(1, 1)),
    )
    return raw, dev


# ------------------------------ NumPy reference --------------------------------
def _np_convtranspose_stage(w, b, x):
    # ConvTranspose2d(1, 1, [3, 32], stride=[1, 16], padding=[1, 8]) on [B, M, T].
    Bb, M, T = x.shape
    W = np.asarray(w)[0, 0]
    full = np.zeros((Bb, M + 2, UP * T + UP), np.float32)
    for i in range(M):
        for j in range(T):
            full[:, i:i + 3, UP * j:UP * j + KW] += x[:, i, j][:, None, None] * W[None, :, :]
    return full[:, 1:1 + M, 8:8 + UP * T] + b[0]


def np_reference(raw, x):
    y = _np_convtranspose_stage(raw['w1'], raw['b1'], x)
    y = np.where(y >= 0.0, y, LEAK * y)
    y = _np_convtranspose_stage(raw['w2'], raw['b2'], y)
    y = np.where(y >= 0.0, y, LEAK * y)
    return y


# ------------------------------------ main -------------------------------------
if __name__ == "__main__":
    raw, dev = build_params(np.random.RandomState(0), B, N_MELS, T_SPEC)

    x = jax.random.normal(jax.random.PRNGKey(0), (B, N_MELS, T_SPEC), dtype=jnp.float32)

    out = spectrogram_upsampler(x, dev)
    out = jax.block_until_ready(out)
    assert out.shape == (B, N_MELS, UP * UP * T_SPEC)

    ref = np_reference(raw, np.asarray(x))
    # Tolerance tightened vs. previous version; 2e-3 leaves margin for possible
    # bf16-pass rounding of f32 MXU matmuls while still being a real check.
    np.testing.assert_allclose(np.asarray(out), ref, rtol=2e-3, atol=2e-3)
    print("KERNEL_OK")
</pallas_src>

<mosaic_0001>
module attributes {stable_mosaic.version = 11 : i64} {
  func.func @_upsampler_kernel(%arg0: memref<16x4xf32, #tpu.memory_space<vmem>>, %arg1: memref<2x16x16xf32, #tpu.memory_space<vmem>>, %arg2: memref<3x4x64xf32, #tpu.memory_space<vmem>>, %arg3: memref<3x64x1024xf32, #tpu.memory_space<vmem>>, %arg4: memref<1x1xf32, #tpu.memory_space<vmem>>, %arg5: memref<1x1xf32, #tpu.memory_space<vmem>>, %arg6: memref<16x1024xf32, #tpu.memory_space<vmem>>) attributes {dimension_semantics = [], scalar_prefetch = 0 : i64, scratch_operands = 0 : i64, tpu.core_type = #tpu.core_type<tc>} {
    %c0 = arith.constant 0 : index
    %c0_0 = arith.constant 0 : index
    %c0_1 = arith.constant 0 : index
    %0 = vector.load %arg1[%c0, %c0_0, %c0_1] : memref<2x16x16xf32, #tpu.memory_space<vmem>>, vector<1x16x16xf32>
    %1 = vector.shape_cast %0 : vector<1x16x16xf32> to vector<16x16xf32>
    %c1 = arith.constant 1 : index
    %c0_2 = arith.constant 0 : index
    %c0_3 = arith.constant 0 : index
    %2 = vector.load %arg1[%c1, %c0_2, %c0_3] : memref<2x16x16xf32, #tpu.memory_space<vmem>>, vector<1x16x16xf32>
    %3 = vector.shape_cast %2 : vector<1x16x16xf32> to vector<16x16xf32>
    %c0_4 = arith.constant 0 : index
    %c0_5 = arith.constant 0 : index
    %4 = vector.load %arg0[%c0_4, %c0_5] : memref<16x4xf32, #tpu.memory_space<vmem>>, vector<16x4xf32>
    %c0_6 = arith.constant 0 : index
    %c0_7 = arith.constant 0 : index
    %5 = vector.load %arg4[%c0_6, %c0_7] : memref<1x1xf32, #tpu.memory_space<vmem>>, vector<1x1xf32>
    %cst = arith.constant dense<0.000000e+00> : vector<16x4xf32>
    %6 = tpu.matmul %1, %4, %cst {dimension_numbers = #tpu.dot_dimension_numbers<[1], [0], [0], [1], [0, 0, 1, 1], [], []>} : vector<16x16xf32>, vector<16x4xf32>, vector<16x4xf32> -> vector<16x4xf32>
    %c0_8 = arith.constant 0 : index
    %c0_9 = arith.constant 0 : index
    %c0_10 = arith.constant 0 : index
    %7 = vector.load %arg2[%c0_8, %c0_9, %c0_10] : memref<3x4x64xf32, #tpu.memory_space<vmem>>, vector<1x4x64xf32>
    %8 = vector.shape_cast %7 : vector<1x4x64xf32> to vector<4x64xf32>
    %cst_11 = arith.constant dense<0.000000e+00> : vector<16x64xf32>
    %9 = tpu.matmul %6, %8, %cst_11 {dimension_numbers = #tpu.dot_dimension_numbers<[1], [0], [0], [1], [0, 0, 1, 1], [], []>} : vector<16x4xf32>, vector<4x64xf32>, vector<16x64xf32> -> vector<16x64xf32>
    %c1_12 = arith.constant 1 : index
    %c0_13 = arith.constant 0 : index
    %c0_14 = arith.constant 0 : index
    %10 = vector.load %arg2[%c1_12, %c0_13, %c0_14] : memref<3x4x64xf32, #tpu.memory_space<vmem>>, vector<1x4x64xf32>
    %11 = vector.shape_cast %10 : vector<1x4x64xf32> to vector<4x64xf32>
    %cst_15 = arith.constant dense<0.000000e+00> : vector<16x64xf32>
    %12 = tpu.matmul %4, %11, %cst_15 {dimension_numbers = #tpu.dot_dimension_numbers<[1], [0], [0], [1], [0, 0, 1, 1], [], []>} : vector<16x4xf32>, vector<4x64xf32>, vector<16x64xf32> -> vector<16x64xf32>
    %13 = arith.addf %9, %12 : vector<16x64xf32>
    %cst_16 = arith.constant dense<0.000000e+00> : vector<16x4xf32>
    %14 = tpu.matmul %3, %4, %cst_16 {dimension_numbers = #tpu.dot_dimension_numbers<[1], [0], [0], [1], [0, 0, 1, 1], [], []>} : vector<16x16xf32>, vector<16x4xf32>, vector<16x4xf32> -> vector<16x4xf32>
    %c2 = arith.constant 2 : index
    %c0_17 = arith.constant 0 : index
    %c0_18 = arith.constant 0 : index
    %15 = vector.load %arg2[%c2, %c0_17, %c0_18] : memref<3x4x64xf32, #tpu.memory_space<vmem>>, vector<1x4x64xf32>
    %16 = vector.shape_cast %15 : vector<1x4x64xf32> to vector<4x64xf32>
    %cst_19 = arith.constant dense<0.000000e+00> : vector<16x64xf32>
    %17 = tpu.matmul %14, %16, %cst_19 {dimension_numbers = #tpu.dot_dimension_numbers<[1], [0], [0], [1], [0, 0, 1, 1], [], []>} : vector<16x4xf32>, vector<4x64xf32>, vector<16x64xf32> -> vector<16x64xf32>
    %18 = arith.addf %13, %17 : vector<16x64xf32>
    %19 = vector.broadcast %5 : vector<1x1xf32> to vector<16x64xf32>
    %20 = arith.addf %18, %19 : vector<16x64xf32>
    %cst_20 = arith.constant 0.000000e+00 : f32
    %21 = vector.broadcast %cst_20 : f32 to vector<16x64xf32>
    %22 = arith.cmpf oge, %20, %21 : vector<16x64xf32>
    %cst_21 = arith.constant 4.000000e-01 : f32
    %23 = vector.broadcast %cst_21 : f32 to vector<16x64xf32>
    %24 = arith.mulf %23, %20 : vector<16x64xf32>
    %25 = arith.select %22, %20, %24 : vector<16x64xi1>, vector<16x64xf32>
    %c0_22 = arith.constant 0 : index
    %c0_23 = arith.constant 0 : index
    %26 = vector.load %arg5[%c0_22, %c0_23] : memref<1x1xf32, #tpu.memory_space<vmem>>, vector<1x1xf32>
    %cst_24 = arith.constant dense<0.000000e+00> : vector<16x64xf32>
    %27 = tpu.matmul %1, %25, %cst_24 {dimension_numbers = #tpu.dot_dimension_numbers<[1], [0], [0], [1], [0, 0, 1, 1], [], []>} : vector<16x16xf32>, vector<16x64xf32>, vector<16x64xf32> -> vector<16x64xf32>
    %c0_25 = arith.constant 0 : index
    %c0_26 = arith.constant 0 : index
    %c0_27 = arith.constant 0 : index
    %28 = vector.load %arg3[%c0_25, %c0_26, %c0_27] : memref<3x64x1024xf32, #tpu.memory_space<vmem>>, vector<1x64x1024xf32>
    %29 = vector.shape_cast %28 : vector<1x64x1024xf32> to vector<64x1024xf32>
    %cst_28 = arith.constant dense<0.000000e+00> : vector<16x1024xf32>
    %30 = tpu.matmul %27, %29, %cst_28 {dimension_numbers = #tpu.dot_dimension_numbers<[1], [0], [0], [1], [0, 0, 1, 1], [], []>} : vector<16x64xf32>, vector<64x1024xf32>, vector<16x1024xf32> -> vector<16x1024xf32>
    %c1_29 = arith.constant 1 : index
    %c0_30 = arith.constant 0 : index
    %c0_31 = arith.constant 0 : index
    %31 = vector.load %arg3[%c1_29, %c0_30, %c0_31] : memref<3x64x1024xf32, #tpu.memory_space<vmem>>, vector<1x64x1024xf32>
    %32 = vector.shape_cast %31 : vector<1x64x1024xf32> to vector<64x1024xf32>
    %cst_32 = arith.constant dense<0.000000e+00> : vector<16x1024xf32>
    %33 = tpu.matmul %25, %32, %cst_32 {dimension_numbers = #tpu.dot_dimension_numbers<[1], [0], [0], [1], [0, 0, 1, 1], [], []>} : vector<16x64xf32>, vector<64x1024xf32>, vector<16x1024xf32> -> vector<16x1024xf32>
    %34 = arith.addf %30, %33 : vector<16x1024xf32>
    %cst_33 = arith.constant dense<0.000000e+00> : vector<16x64xf32>
    %35 = tpu.matmul %3, %25, %cst_33 {dimension_numbers = #tpu.dot_dimension_numbers<[1], [0], [0], [1], [0, 0, 1, 1], [], []>} : vector<16x16xf32>, vector<16x64xf32>, vector<16x64xf32> -> vector<16x64xf32>
    %c2_34 = arith.constant 2 : index
    %c0_35 = arith.constant 0 : index
    %c0_36 = arith.constant 0 : index
    %36 = vector.load %arg3[%c2_34, %c0_35, %c0_36] : memref<3x64x1024xf32, #tpu.memory_space<vmem>>, vector<1x64x1024xf32>
    %37 = vector.shape_cast %36 : vector<1x64x1024xf32> to vector<64x1024xf32>
    %cst_37 = arith.constant dense<0.000000e+00> : vector<16x1024xf32>
    %38 = tpu.matmul %35, %37, %cst_37 {dimension_numbers = #tpu.dot_dimension_numbers<[1], [0], [0], [1], [0, 0, 1, 1], [], []>} : vector<16x64xf32>, vector<64x1024xf32>, vector<16x1024xf32> -> vector<16x1024xf32>
    %39 = arith.addf %34, %38 : vector<16x1024xf32>
    %40 = vector.broadcast %26 : vector<1x1xf32> to vector<16x1024xf32>
    %41 = arith.addf %39, %40 : vector<16x1024xf32>
    %cst_38 = arith.constant 0.000000e+00 : f32
    %42 = vector.broadcast %cst_38 : f32 to vector<16x1024xf32>
    %43 = arith.cmpf oge, %41, %42 : vector<16x1024xf32>
    %cst_39 = arith.constant 4.000000e-01 : f32
    %44 = vector.broadcast %cst_39 : f32 to vector<16x1024xf32>
    %45 = arith.mulf %44, %41 : vector<16x1024xf32>
    %46 = arith.select %43, %41, %45 : vector<16x1024xi1>, vector<16x1024xf32>
    %c0_40 = arith.constant 0 : index
    %c0_41 = arith.constant 0 : index
    %47 = vector.load %arg6[%c0_40, %c0_41] : memref<16x1024xf32, #tpu.memory_space<vmem>>, vector<16x1024xf32>
    tpu.vector_store %arg6[%c0_40, %c0_41], %46 {strides = array<i32>} : memref<16x1024xf32, #tpu.memory_space<vmem>>, vector<16x1024xf32>,
    return
  }
}

</mosaic_0001>

<llo_original>
// kernel: tpu_custom_call.1
$region0: #{tpu_custom_call.1}
  #allocation0 [shape = 'u32[]', space=smem, size = 0x4, offset = 0x4, fixed_abs, tag = 'smem constant byte address 0x4 - core index']
  #allocation1 [shape = 'u32[72,128]{1,0:T(1,128)}', space=vmem, size = 0x9000, scoped, tag = 'internal scratch']
  #allocation2 [shape = 'f32[1,1]{1,0:T(1,128)S(1)}', space=vmem, size = 0x200, scoped, tag = 'scoped memory for tpu_custom_call.1']
  #allocation3 [shape = 'f32[1,1]{1,0:T(1,128)S(1)}', space=vmem, size = 0x200, scoped, tag = 'scoped memory for tpu_custom_call.1']
  %s0 = inlined_call_operand.vmem [shape: f32[16,4], index: 0, kind: input, shape index: {}]
  %s1 = inlined_call_operand.hbm [shape: f32[2,16,16], index: 1, kind: input, shape index: {}]
  %s2 = inlined_call_operand.vmem [shape: f32[3,4,64], index: 2, kind: input, shape index: {}]
  %s3 = inlined_call_operand.hbm [shape: f32[3,64,1024], index: 3, kind: input, shape index: {}]
  %s4 = inlined_call_operand.<no memory space> [shape: f32[1,1], index: 4, kind: input, shape index: {}]
  %s5 = inlined_call_operand.<no memory space> [shape: f32[1,1], index: 5, kind: input, shape index: {}]
  %s6 = inlined_call_operand.hbm [shape: f32[16,1024], index: 6, kind: output, shape index: {}]
  %s7 = sld [smem:[#allocation0]]
  $region42: #{tpu_custom_call.1} parent=0
    _
  %s9 = ssub.s32 1, %s7
  %s10 = scalar_select 0, %s9, %s7
  %v11 = vstv %s4
  %12 = vst [vmem:[#allocation2] sm:$0x1] %v11
  %v13 = vstv %s5
  %14 = vst [vmem:[#allocation3] sm:$0x1] %v13
  $region1: #{tpu_custom_call.1} parent=0
    #allocation4 [shape = 'u8[16384]{0}', space=vmem, size = 0x4000, scoped, tag = 'input window, operand 1, single buffered']
    #allocation5 [shape = 's32[1]{0}', space=sflag, size = 0x4, scoped, tag = 'scoped memory for tpu_custom_call.1']
    #allocation6 [shape = 's32[1]{0}', space=sflag, size = 0x4, scoped, tag = 'scoped memory for tpu_custom_call.1']
    #allocation7 [shape = 'u8[786432]{0}', space=vmem, size = 0xc0000, scoped, tag = 'input window, operand 3, single buffered']
    #allocation8 [shape = 's32[1]{0}', space=sflag, size = 0x4, scoped, tag = 'scoped memory for tpu_custom_call.1']
    #allocation9 [shape = 'u8[65536]{0}', space=vmem, size = 0x10000, scoped, tag = 'output window, operand 0, single buffered']
    %15 = vsyncpa [#allocation5], 0
    %16 = vsyncpa [#allocation8], 0
    %17 = vsyncpa [#allocation6], 0
    // Predicated region
    $region2: #{tpu_custom_call.1} parent=1 // pred_check
      _
    $region3: #{tpu_custom_call.1} parent=1 // pred_check_branch
      %19 = sbr.rel (0) target = $region5
    $region4: #{tpu_custom_call.1} parent=1 // pred_region
      _
    $region5: #{tpu_custom_call.1} parent=1 // pred_fallthru
      _
    // Predicated region
    $region6: #{tpu_custom_call.1} parent=1 // pred_check
      _
    $region7: #{tpu_custom_call.1} parent=1 // pred_check_branch
      %21 = sbr.rel (0) target = $region9
    $region8: #{tpu_custom_call.1} parent=1 // pred_region
      %23 = vsyncadd [#allocation5], 0
      %s24 = sshll.u32 %s1, 4
      %s25 = int_to_ptr.hbm [resolvable:$true] %s24
      %s26 = sshll.u32 [#allocation4], 4
      %s27 = int_to_ptr.vmem [resolvable:$true] %s26
      %32 = dma.hbm_to_vmem [thread:$0]  %s25, 512, %s27, [#allocation5], 128, 128, 8
    $region9: #{tpu_custom_call.1} parent=1 // pred_fallthru
      _
    // Predicated region
    $region10: #{tpu_custom_call.1} parent=1 // pred_check
      _
    $region11: #{tpu_custom_call.1} parent=1 // pred_check_branch
      %34 = sbr.rel (0) target = $region13
    $region12: #{tpu_custom_call.1} parent=1 // pred_region
      _
    $region13: #{tpu_custom_call.1} parent=1 // pred_fallthru
      _
    // Predicated region
    $region14: #{tpu_custom_call.1} parent=1 // pred_check
      _
    $region15: #{tpu_custom_call.1} parent=1 // pred_check_branch
      %36 = sbr.rel (0) target = $region17
    $region16: #{tpu_custom_call.1} parent=1 // pred_region
      %38 = vsyncadd [#allocation8], 0
      %s39 = sshll.u32 %s3, 4
      %s40 = int_to_ptr.hbm [resolvable:$true] %s39
      %s41 = sshll.u32 [#allocation7], 4
      %s42 = int_to_ptr.vmem [resolvable:$true] %s41
      %47 = dma.hbm_to_vmem [thread:$0]  %s40, 24576, %s42, [#allocation8], 1024, 1024, 64
    $region17: #{tpu_custom_call.1} parent=1 // pred_fallthru
      _
    // Predicated region
    $region18: #{tpu_custom_call.1} parent=1 // pred_check
      _
    $region19: #{tpu_custom_call.1} parent=1 // pred_check_branch
      %49 = sbr.rel (0) target = $region21
    $region20: #{tpu_custom_call.1} parent=1 // pred_region
      _
    $region21: #{tpu_custom_call.1} parent=1 // pred_fallthru
      _
    // Predicated region
    $region22: #{tpu_custom_call.1} parent=1 // pred_check
      _
    $region23: #{tpu_custom_call.1} parent=1 // pred_check_branch
      %51 = sbr.rel (0) target = $region25
    $region24: #{tpu_custom_call.1} parent=1 // pred_region
      _
    $region25: #{tpu_custom_call.1} parent=1 // pred_fallthru
      _
    // Predicated region
    $region26: #{tpu_custom_call.1} parent=1 // pred_check
      _
    $region27: #{tpu_custom_call.1} parent=1 // pred_check_branch
      %53 = sbr.rel (0) target = $region29
    $region28: #{tpu_custom_call.1} parent=1 // pred_region
      %55 = dma.done [#allocation5], 512
    $region29: #{tpu_custom_call.1} parent=1 // pred_fallthru
      _
    // Predicated region
    $region30: #{tpu_custom_call.1} parent=1 // pred_check
      _
    $region31: #{tpu_custom_call.1} parent=1 // pred_check_branch
      %57 = sbr.rel (0) target = $region33
    $region32: #{tpu_custom_call.1} parent=1 // pred_region
      %59 = dma.done [#allocation8], 24576
    $region33: #{tpu_custom_call.1} parent=1 // pred_fallthru
      _
    %v60 = vld [vmem:[#allocation4] sm:$0xff]
    %v61 = vld [vmem:[#allocation4 + $0x8] sm:$0xff]
    %s62 = scalar_lea.vmem [#allocation4], 16
    %v63 = vld [vmem:[%s62] sm:$0xff]
    %v64 = vld [vmem:[%s62 + $0x8] sm:$0xff]
    %v65 = vld [vmem:[%s0] sm:$0xff]
    %v66 = vld [vmem:[%s0 + $0x8] sm:$0xff]
    %v67 = vld [vmem:[#allocation2] sm:$0x1]
    %vm68 = vcmask 130048
    %v70 = vsel %vm68, %v60, 0
    %v73 = vsel %vm68, %v61, 0
    %75 = vmatpush.msra.mxu0 0.0
    %76 = vmatpush.msra.mxu0 0.0
    %77 = vmatpush.msra.mxu0 0.0
    %78 = vmatpush.msra.mxu0 0.0
    %79 = vmatpush.msra.mxu0 0.0
    %80 = vmatpush.msra.mxu0 0.0
    %81 = vmatpush.msra.mxu0 0.0
    %82 = vmatpush.msra.mxu0 0.0
    %83 = vmatpush.msra.mxu0 0.0
    %84 = vmatpush.msra.mxu0 0.0
    %85 = vmatpush.msra.mxu0 0.0
    %86 = vmatpush.msra.mxu0 0.0
    %87 = vmatpush.msra.mxu0 0.0
    %88 = vmatpush.msra.mxu0 0.0
    %89 = vmatpush.msra.mxu0 %v66
    %90 = vmatpush.msra.mxu0 %v65
    %91 = vmatmul.f32.gmra.mxu0 %v70
    %v92 = vpop.f32.mrf.mxu0
    %v93 = vadd.f32 0.0, %v92
    %94 = vmatmul.f32.gmra.mxu0 %v73
    %v95 = vpop.f32.mrf.mxu0
    %v96 = vadd.f32 0.0, %v95
    %97 = vdwg.mxu0
    %v98 = vld [vmem:[%s2] sm:$0xf]
    %s99 = scalar_lea.vmem %s2, 4
    %v100 = vld [vmem:[%s99] sm:$0xf]
    %vm101 = vcmask 31744
    %v103 = vsel %vm101, %v65, 0
    %v106 = vsel %vm101, %v66, 0
    %vm108 = vcmask 1043456
    %v110 = vsel %vm108, %v100, 0
    %112 = vmatpush.msra.mxu0 0.0
    %113 = vmatpush.msra.mxu0 0.0
    %114 = vmatpush.msra.mxu0 0.0
    %115 = vmatpush.msra.mxu0 0.0
    %116 = vmatpush.msra.mxu0 0.0
    %117 = vmatpush.msra.mxu0 0.0
    %118 = vmatpush.msra.mxu0 0.0
    %119 = vmatpush.msra.mxu0 0.0
    %120 = vmatpush.msra.mxu0 0.0
    %121 = vmatpush.msra.mxu0 0.0
    %122 = vmatpush.msra.mxu0 0.0
    %123 = vmatpush.msra.mxu0 0.0
    %124 = vmatpush.msra.mxu0 0.0
    %125 = vmatpush.msra.mxu0 0.0
    %126 = vmatpush.msra.mxu0 0.0
    %127 = vmatpush.msra.mxu0 %v110
    %128 = vmatmul.f32.gmra.mxu0 %v103
    %v129 = vpop.f32.mrf.mxu0
    %v130 = vadd.f32 0.0, %v129
    %131 = vmatmul.f32.gmra.mxu0 %v106
    %v132 = vpop.f32.mrf.mxu0
    %v133 = vadd.f32 0.0, %v132
    %134 = vdwg.mxu0
    %v136 = vsel %vm101, %v93, 0
    %v139 = vsel %vm101, %v96, 0
    %v142 = vsel %vm108, %v98, 0
    %144 = vmatpush.msra.mxu0 0.0
    %145 = vmatpush.msra.mxu0 0.0
    %146 = vmatpush.msra.mxu0 0.0
    %147 = vmatpush.msra.mxu0 0.0
    %148 = vmatpush.msra.mxu0 0.0
    %149 = vmatpush.msra.mxu0 0.0
    %150 = vmatpush.msra.mxu0 0.0
    %151 = vmatpush.msra.mxu0 0.0
    %152 = vmatpush.msra.mxu0 0.0
    %153 = vmatpush.msra.mxu0 0.0
    %154 = vmatpush.msra.mxu0 0.0
    %155 = vmatpush.msra.mxu0 0.0
    %156 = vmatpush.msra.mxu0 0.0
    %157 = vmatpush.msra.mxu0 0.0
    %158 = vmatpush.msra.mxu0 0.0
    %159 = vmatpush.msra.mxu0 %v142
    %160 = vmatmul.f32.gmra.mxu0 %v136
    %v161 = vpop.f32.mrf.mxu0
    %v162 = vadd.f32 %v130, %v161
    %163 = vmatmul.f32.gmra.mxu0 %v139
    %v164 = vpop.f32.mrf.mxu0
    %v165 = vadd.f32 %v133, %v164
    %166 = vdwg.mxu0
    %v168 = vsel %vm68, %v63, 0
    %v171 = vsel %vm68, %v64, 0
    %173 = vmatpush.msra.mxu0 0.0
    %174 = vmatpush.msra.mxu0 0.0
    %175 = vmatpush.msra.mxu0 0.0
    %176 = vmatpush.msra.mxu0 0.0
    %177 = vmatpush.msra.mxu0 0.0
    %178 = vmatpush.msra.mxu0 0.0
    %179 = vmatpush.msra.mxu0 0.0
    %180 = vmatpush.msra.mxu0 0.0
    %181 = vmatpush.msra.mxu0 0.0
    %182 = vmatpush.msra.mxu0 0.0
    %183 = vmatpush.msra.mxu0 0.0
    %184 = vmatpush.msra.mxu0 0.0
    %185 = vmatpush.msra.mxu0 0.0
    %186 = vmatpush.msra.mxu0 0.0
    %187 = vmatpush.msra.mxu0 %v66
    %188 = vmatpush.msra.mxu0 %v65
    %189 = vmatmul.f32.gmra.mxu0 %v168
    %v190 = vpop.f32.mrf.mxu0
    %v191 = vadd.f32 0.0, %v190
    %192 = vmatmul.f32.gmra.mxu0 %v171
    %v193 = vpop.f32.mrf.mxu0
    %v194 = vadd.f32 0.0, %v193
    %195 = vdwg.mxu0
    %s196 = scalar_lea.vmem %s2, 8
    %v197 = vld [vmem:[%s196] sm:$0xf]
    %v199 = vsel %vm101, %v191, 0
    %v202 = vsel %vm101, %v194, 0
    %v205 = vsel %vm108, %v197, 0
    %207 = vmatpush.msra.mxu0 0.0
    %208 = vmatpush.msra.mxu0 0.0
    %209 = vmatpush.msra.mxu0 0.0
    %210 = vmatpush.msra.mxu0 0.0
    %211 = vmatpush.msra.mxu0 0.0
    %212 = vmatpush.msra.mxu0 0.0
    %213 = vmatpush.msra.mxu0 0.0
    %214 = vmatpush.msra.mxu0 0.0
    %215 = vmatpush.msra.mxu0 0.0
    %216 = vmatpush.msra.mxu0 0.0
    %217 = vmatpush.msra.mxu0 0.0
    %218 = vmatpush.msra.mxu0 0.0
    %219 = vmatpush.msra.mxu0 0.0
    %220 = vmatpush.msra.mxu0 0.0
    %221 = vmatpush.msra.mxu0 0.0
    %222 = vmatpush.msra.mxu0 %v205
    %223 = vmatmul.f32.gmra.mxu0 %v199
    %v224 = vpop.f32.mrf.mxu0
    %v225 = vadd.f32 0.0, %v224
    %226 = vmatmul.f32.gmra.mxu0 %v202
    %v227 = vpop.f32.mrf.mxu0
    %v228 = vadd.f32 0.0, %v227
    %229 = vdwg.mxu0
    %v230 = vadd.f32 %v162, %v225
    %v231 = vadd.f32 %v165, %v228
    %v233 = vperm.slane %v67, 0
    %234 = vset.pattern.permute.xlu0 0
    %235 = vperm.xlu0 %234, %v233
    %v236 = vpop.permute.xlu0 %235
    %v238 = vadd.f32 %v230, %v236
    %v239 = vadd.f32 %v231, %v236
    %vm240 = vcmp.ge.f32.partialorder %v238, 0.0
    %vm241 = vcmp.ge.f32.partialorder %v239, 0.0
    %v242 = vmul.f32 %v238, 0.4
    %v243 = vmul.f32 %v239, 0.4
    %v244 = vsel %vm240, %v238, %v242
    %v245 = vsel %vm241, %v239, %v243
    %v246 = vld [vmem:[#allocation3] sm:$0x1]
    %247 = vmatpush.msra.mxu0 0.0
    %248 = vmatpush.msra.mxu0 0.0
    %249 = vmatpush.msra.mxu0 0.0
    %250 = vmatpush.msra.mxu0 0.0
    %251 = vmatpush.msra.mxu0 0.0
    %252 = vmatpush.msra.mxu0 0.0
    %253 = vmatpush.msra.mxu0 0.0
    %254 = vmatpush.msra.mxu0 0.0
    %255 = vmatpush.msra.mxu0 0.0
    %256 = vmatpush.msra.mxu0 0.0
    %257 = vmatpush.msra.mxu0 0.0
    %258 = vmatpush.msra.mxu0 0.0
    %259 = vmatpush.msra.mxu0 0.0
    %260 = vmatpush.msra.mxu0 0.0
    %261 = vmatpush.msra.mxu0 %v245
    %262 = vmatpush.msra.mxu0 %v244
    %263 = vmatmul.f32.gmra.mxu0 %v70
    %v264 = vpop.f32.mrf.mxu0
    %v265 = vadd.f32 0.0, %v264
    %266 = vmatmul.f32.gmra.mxu0 %v73
    %v267 = vpop.f32.mrf.mxu0
    %v268 = vadd.f32 0.0, %v267
    %269 = vdwg.mxu0
    %v270 = vld [vmem:[#allocation7] sm:$0xff]
    %v271 = vld [vmem:[#allocation7 + $0x8] sm:$0xff]
    %v272 = vld [vmem:[#allocation7 + $0x10] sm:$0xff]
    %v273 = vld [vmem:[#allocation7 + $0x18] sm:$0xff]
    %v274 = vld [vmem:[#allocation7 + $0x20] sm:$0xff]
    %v275 = vld [vmem:[#allocation7 + $0x28] sm:$0xff]
    %v276 = vld [vmem:[#allocation7 + $0x30] sm:$0xff]
    %v277 = vld [vmem:[#allocation7 + $0x38] sm:$0xff]
    %v278 = vld [vmem:[#allocation7 + $0x40] sm:$0xff]
    %v279 = vld [vmem:[#allocation7 + $0x48] sm:$0xff]
    %v280 = vld [vmem:[#allocation7 + $0x50] sm:$0xff]
    %v281 = vld [vmem:[#allocation7 + $0x58] sm:$0xff]
    %v282 = vld [vmem:[#allocation7 + $0x60] sm:$0xff]
    %v283 = vld [vmem:[#allocation7 + $0x68] sm:$0xff]
    %v284 = vld [vmem:[#allocation7 + $0x70] sm:$0xff]
    %v285 = vld [vmem:[#allocation7 + $0x78] sm:$0xff]
    %v286 = vld [vmem:[#allocation7 + $0x80] sm:$0xff]
    %v287 = vld [vmem:[#allocation7 + $0x88] sm:$0xff]
    %v288 = vld [vmem:[#allocation7 + $0x90] sm:$0xff]
    %v289 = vld [vmem:[#allocation7 + $0x98] sm:$0xff]
    %v290 = vld [vmem:[#allocation7 + $0xa0] sm:$0xff]
    %v291 = vld [vmem:[#allocation7 + $0xa8] sm:$0xff]
    %v292 = vld [vmem:[#allocation7 + $0xb0] sm:$0xff]
    %v293 = vld [vmem:[#allocation7 + $0xb8] sm:$0xff]
    %v294 = vld [vmem:[#allocation7 + $0xc0] sm:$0xff]
    %v295 = vld [vmem:[#allocation7 + $0xc8] sm:$0xff]
    %v296 = vld [vmem:[#allocation7 + $0xd0] sm:$0xff]
    %v297 = vld [vmem:[#allocation7 + $0xd8] sm:$0xff]
    %v298 = vld [vmem:[#allocation7 + $0xe0] sm:$0xff]
    %v299 = vld [vmem:[#allocation7 + $0xe8] sm:$0xff]
    %v300 = vld [vmem:[#allocation7 + $0xf0] sm:$0xff]
    %v301 = vld [vmem:[#allocation7 + $0xf8] sm:$0xff]
    %v302 = vld [vmem:[#allocation7 + $0x100] sm:$0xff]
    %v303 = vld [vmem:[#allocation7 + $0x108] sm:$0xff]
    %v304 = vld [vmem:[#allocation7 + $0x110] sm:$0xff]
    %v305 = vld [vmem:[#allocation7 + $0x118] sm:$0xff]
    %v306 = vld [vmem:[#allocation7 + $0x120] sm:$0xff]
    %v307 = vld [vmem:[#allocation7 + $0x128] sm:$0xff]
    %v308 = vld [vmem:[#allocation7 + $0x130] sm:$0xff]
    %v309 = vld [vmem:[#allocation7 + $0x138] sm:$0xff]
    %v310 = vld [vmem:[#allocation7 + $0x140] sm:$0xff]
    %v311 = vld [vmem:[#allocation7 + $0x148] sm:$0xff]
    %v312 = vld [vmem:[#allocation7 + $0x150] sm:$0xff]
    %v313 = vld [vmem:[#allocation7 + $0x158] sm:$0xff]
    %v314 = vld [vmem:[#allocation7 + $0x160] sm:$0xff]
    %v315 = vld [vmem:[#allocation7 + $0x168] sm:$0xff]
    %v316 = vld [vmem:[#allocation7 + $0x170] sm:$0xff]
    %v317 = vld [vmem:[#allocation7 + $0x178] sm:$0xff]
    %v318 = vld [vmem:[#allocation7 + $0x180] sm:$0xff]
    %v319 = vld [vmem:[#allocation7 + $0x188] sm:$0xff]
    %v320 = vld [vmem:[#allocation7 + $0x190] sm:$0xff]
    %v321 = vld [vmem:[#allocation7 + $0x198] sm:$0xff]
    %v322 = vld [vmem:[#allocation7 + $0x1a0] sm:$0xff]
    %v323 = vld [vmem:[#allocation7 + $0x1a8] sm:$0xff]
    %v324 = vld [vmem:[#allocation7 + $0x1b0] sm:$0xff]
    %v325 = vld [vmem:[#allocation7 + $0x1b8] sm:$0xff]
    %v326 = vld [vmem:[#allocation7 + $0x1c0] sm:$0xff]
    %v327 = vld [vmem:[#allocation7 + $0x1c8] sm:$0xff]
    %v328 = vld [vmem:[#allocation7 + $0x1d0] sm:$0xff]
    %v329 = vld [vmem:[#allocation7 + $0x1d8] sm:$0xff]
    %v330 = vld [vmem:[#allocation7 + $0x1e0] sm:$0xff]
    %v331 = vld [vmem:[#allocation7 + $0x1e8] sm:$0xff]
    %v332 = vld [vmem:[#allocation7 + $0x1f0] sm:$0xff]
    %v333 = vld [vmem:[#allocation7 + $0x1f8] sm:$0xff]
    %s334 = scalar_lea.vmem [#allocation7], 512
    %v335 = vld [vmem:[%s334] sm:$0xff]
    %v336 = vld [vmem:[%s334 + $0x8] sm:$0xff]
    %v337 = vld [vmem:[%s334 + $0x10] sm:$0xff]
    %v338 = vld [vmem:[%s334 + $0x18] sm:$0xff]
    %v339 = vld [vmem:[%s334 + $0x20] sm:$0xff]
    %v340 = vld [vmem:[%s334 + $0x28] sm:$0xff]
    %v341 = vld [vmem:[%s334 + $0x30] sm:$0xff]
    %v342 = vld [vmem:[%s334 + $0x38] sm:$0xff]
    %v343 = vld [vmem:[%s334 + $0x40] sm:$0xff]
    %v344 = vld [vmem:[%s334 + $0x48] sm:$0xff]
    %v345 = vld [vmem:[%s334 + $0x50] sm:$0xff]
    %v346 = vld [vmem:[%s334 + $0x58] sm:$0xff]
    %v347 = vld [vmem:[%s334 + $0x60] sm:$0xff]
    %v348 = vld [vmem:[%s334 + $0x68] sm:$0xff]
    %v349 = vld [vmem:[%s334 + $0x70] sm:$0xff]
    %v350 = vld [vmem:[%s334 + $0x78] sm:$0xff]
    %v351 = vld [vmem:[%s334 + $0x80] sm:$0xff]
    %v352 = vld [vmem:[%s334 + $0x88] sm:$0xff]
    %v353 = vld [vmem:[%s334 + $0x90] sm:$0xff]
    %v354 = vld [vmem:[%s334 + $0x98] sm:$0xff]
    %v355 = vld [vmem:[%s334 + $0xa0] sm:$0xff]
    %v356 = vld [vmem:[%s334 + $0xa8] sm:$0xff]
    %v357 = vld [vmem:[%s334 + $0xb0] sm:$0xff]
    %v358 = vld [vmem:[%s334 + $0xb8] sm:$0xff]
    %v359 = vld [vmem:[%s334 + $0xc0] sm:$0xff]
    %v360 = vld [vmem:[%s334 + $0xc8] sm:$0xff]
    %v361 = vld [vmem:[%s334 + $0xd0] sm:$0xff]
    %v362 = vld [vmem:[%s334 + $0xd8] sm:$0xff]
    %v363 = vld [vmem:[%s334 + $0xe0] sm:$0xff]
    %v364 = vld [vmem:[%s334 + $0xe8] sm:$0xff]
    %v365 = vld [vmem:[%s334 + $0xf0] sm:$0xff]
    %v366 = vld [vmem:[%s334 + $0xf8] sm:$0xff]
    %v367 = vld [vmem:[%s334 + $0x100] sm:$0xff]
    %v368 = vld [vmem:[%s334 + $0x108] sm:$0xff]
    %v369 = vld [vmem:[%s334 + $0x110] sm:$0xff]
    %v370 = vld [vmem:[%s334 + $0x118] sm:$0xff]
    %v371 = vld [vmem:[%s334 + $0x120] sm:$0xff]
    %v372 = vld [vmem:[%s334 + $0x128] sm:$0xff]
    %v373 = vld [vmem:[%s334 + $0x130] sm:$0xff]
    %v374 = vld [vmem:[%s334 + $0x138] sm:$0xff]
    %v375 = vld [vmem:[%s334 + $0x140] sm:$0xff]
    %v376 = vld [vmem:[%s334 + $0x148] sm:$0xff]
    %v377 = vld [vmem:[%s334 + $0x150] sm:$0xff]
    %v378 = vld [vmem:[%s334 + $0x158] sm:$0xff]
    %v379 = vld [vmem:[%s334 + $0x160] sm:$0xff]
    %v380 = vld [vmem:[%s334 + $0x168] sm:$0xff]
    %v381 = vld [vmem:[%s334 + $0x170] sm:$0xff]
    %v382 = vld [vmem:[%s334 + $0x178] sm:$0xff]
    %v383 = vld [vmem:[%s334 + $0x180] sm:$0xff]
    %v384 = vld [vmem:[%s334 + $0x188] sm:$0xff]
    %v385 = vld [vmem:[%s334 + $0x190] sm:$0xff]
    %v386 = vld [vmem:[%s334 + $0x198] sm:$0xff]
    %v387 = vld [vmem:[%s334 + $0x1a0] sm:$0xff]
    %v388 = vld [vmem:[%s334 + $0x1a8] sm:$0xff]
    %v389 = vld [vmem:[%s334 + $0x1b0] sm:$0xff]
    %v390 = vld [vmem:[%s334 + $0x1b8] sm:$0xff]
    %v391 = vld [vmem:[%s334 + $0x1c0] sm:$0xff]
    %v392 = vld [vmem:[%s334 + $0x1c8] sm:$0xff]
    %v393 = vld [vmem:[%s334 + $0x1d0] sm:$0xff]
    %v394 = vld [vmem:[%s334 + $0x1d8] sm:$0xff]
    %v395 = vld [vmem:[%s334 + $0x1e0] sm:$0xff]
    %v396 = vld [vmem:[%s334 + $0x1e8] sm:$0xff]
    %v397 = vld [vmem:[%s334 + $0x1f0] sm:$0xff]
    %v398 = vld [vmem:[%s334 + $0x1f8] sm:$0xff]
    %vm399 = vcmask 523264
    %v401 = vsel %vm399, %v244, 0
    %v404 = vsel %vm399, %v245, 0
    %406 = vmatpush.msra.mxu0 0.0
    %407 = vmatpush.msra.mxu0 0.0
    %408 = vmatpush.msra.mxu0 0.0
    %409 = vmatpush.msra.mxu0 0.0
    %410 = vmatpush.msra.mxu0 0.0
    %411 = vmatpush.msra.mxu0 0.0
    %412 = vmatpush.msra.mxu0 0.0
    %413 = vmatpush.msra.mxu0 0.0
    %414 = vmatpush.msra.mxu0 %v391
    %415 = vmatpush.msra.mxu0 %v383
    %416 = vmatpush.msra.mxu0 %v375
    %417 = vmatpush.msra.mxu0 %v367
    %418 = vmatpush.msra.mxu0 %v359
    %419 = vmatpush.msra.mxu0 %v351
    %420 = vmatpush.msra.mxu0 %v343
    %421 = vmatpush.msra.mxu0 %v335
    %422 = vmatmul.f32.gmra.mxu0 %v401
    %v423 = vpop.f32.mrf.mxu0
    %v424 = vadd.f32 0.0, %v423
    %425 = vmatmul.f32.gmra.mxu0 %v404
    %v426 = vpop.f32.mrf.mxu0
    %v427 = vadd.f32 0.0, %v426
    %428 = vdwg.mxu0
    %429 = vmatpush.msra.mxu0 0.0
    %430 = vmatpush.msra.mxu0 0.0
    %431 = vmatpush.msra.mxu0 0.0
    %432 = vmatpush.msra.mxu0 0.0
    %433 = vmatpush.msra.mxu0 0.0
    %434 = vmatpush.msra.mxu0 0.0
    %435 = vmatpush.msra.mxu0 0.0
    %436 = vmatpush.msra.mxu0 0.0
    %437 = vmatpush.msra.mxu0 %v392
    %438 = vmatpush.msra.mxu0 %v384
    %439 = vmatpush.msra.mxu0 %v376
    %440 = vmatpush.msra.mxu0 %v368
    %441 = vmatpush.msra.mxu0 %v360
    %442 = vmatpush.msra.mxu0 %v352
    %443 = vmatpush.msra.mxu0 %v344
    %444 = vmatpush.msra.mxu0 %v336
    %445 = vmatmul.f32.gmra.mxu0 %v401
    %v446 = vpop.f32.mrf.mxu0
    %v447 = vadd.f32 0.0, %v446
    %448 = vmatmul.f32.gmra.mxu0 %v404
    %v449 = vpop.f32.mrf.mxu0
    %v450 = vadd.f32 0.0, %v449
    %451 = vdwg.mxu0
    %452 = vmatpush.msra.mxu0 0.0
    %453 = vmatpush.msra.mxu0 0.0
    %454 = vmatpush.msra.mxu0 0.0
    %455 = vmatpush.msra.mxu0 0.0
    %456 = vmatpush.msra.mxu0 0.0
    %457 = vmatpush.msra.mxu0 0.0
    %458 = vmatpush.msra.mxu0 0.0
    %459 = vmatpush.msra.mxu0 0.0
    %460 = vmatpush.msra.mxu0 %v393
    %461 = vmatpush.msra.mxu0 %v385
    %462 = vmatpush.msra.mxu0 %v377
    %463 = vmatpush.msra.mxu0 %v369
    %464 = vmatpush.msra.mxu0 %v361
    %465 = vmatpush.msra.mxu0 %v353
    %466 = vmatpush.msra.mxu0 %v345
    %467 = vmatpush.msra.mxu0 %v337
    %468 = vmatmul.f32.gmra.mxu0 %v401
    %v469 = vpop.f32.mrf.mxu0
    %v470 = vadd.f32 0.0, %v469
    %471 = vmatmul.f32.gmra.mxu0 %v404
    %v472 = vpop.f32.mrf.mxu0
    %v473 = vadd.f32 0.0, %v472
    %474 = vdwg.mxu0
    %475 = vmatpush.msra.mxu0 0.0
    %476 = vmatpush.msra.mxu0 0.0
    %477 = vmatpush.msra.mxu0 0.0
    %478 = vmatpush.msra.mxu0 0.0
    %479 = vmatpush.msra.mxu0 0.0
    %480 = vmatpush.msra.mxu0 0.0
    %481 = vmatpush.msra.mxu0 0.0
    %482 = vmatpush.msra.mxu0 0.0
    %483 = vmatpush.msra.mxu0 %v394
    %484 = vmatpush.msra.mxu0 %v386
    %485 = vmatpush.msra.mxu0 %v378
    %486 = vmatpush.msra.mxu0 %v370
    %487 = vmatpush.msra.mxu0 %v362
    %488 = vmatpush.msra.mxu0 %v354
    %489 = vmatpush.msra.mxu0 %v346
    %490 = vmatpush.msra.mxu0 %v338
    %491 = vmatmul.f32.gmra.mxu0 %v401
    %v492 = vpop.f32.mrf.mxu0
    %v493 = vadd.f32 0.0, %v492
    %494 = vmatmul.f32.gmra.mxu0 %v404
    %v495 = vpop.f32.mrf.mxu0
    %v496 = vadd.f32 0.0, %v495
    %497 = vdwg.mxu0
    %498 = vmatpush.msra.mxu0 0.0
    %499 = vmatpush.msra.mxu0 0.0
    %500 = vmatpush.msra.mxu0 0.0
    %501 = vmatpush.msra.mxu0 0.0
    %502 = vmatpush.msra.mxu0 0.0
    %503 = vmatpush.msra.mxu0 0.0
    %504 = vmatpush.msra.mxu0 0.0
    %505 = vmatpush.msra.mxu0 0.0
    %506 = vmatpush.msra.mxu0 %v395
    %507 = vmatpush.msra.mxu0 %v387
    %508 = vmatpush.msra.mxu0 %v379
    %509 = vmatpush.msra.mxu0 %v371
    %510 = vmatpush.msra.mxu0 %v363
    %511 = vmatpush.msra.mxu0 %v355
    %512 = vmatpush.msra.mxu0 %v347
    %513 = vmatpush.msra.mxu0 %v339
    %514 = vmatmul.f32.gmra.mxu0 %v401
    %v515 = vpop.f32.mrf.mxu0
    %v516 = vadd.f32 0.0, %v515
    %517 = vmatmul.f32.gmra.mxu0 %v404
    %v518 = vpop.f32.mrf.mxu0
    %v519 = vadd.f32 0.0, %v518
    %520 = vdwg.mxu0
    %521 = vmatpush.msra.mxu0 0.0
    %522 = vmatpush.msra.mxu0 0.0
    %523 = vmatpush.msra.mxu0 0.0
    %524 = vmatpush.msra.mxu0 0.0
    %525 = vmatpush.msra.mxu0 0.0
    %526 = vmatpush.msra.mxu0 0.0
    %527 = vmatpush.msra.mxu0 0.0
    %528 = vmatpush.msra.mxu0 0.0
    %529 = vmatpush.msra.mxu0 %v396
    %530 = vmatpush.msra.mxu0 %v388
    %531 = vmatpush.msra.mxu0 %v380
    %532 = vmatpush.msra.mxu0 %v372
    %533 = vmatpush.msra.mxu0 %v364
    %534 = vmatpush.msra.mxu0 %v356
    %535 = vmatpush.msra.mxu0 %v348
    %536 = vmatpush.msra.mxu0 %v340
    %537 = vmatmul.f32.gmra.mxu0 %v401
    %v538 = vpop.f32.mrf.mxu0
    %v539 = vadd.f32 0.0, %v538
    %540 = vmatmul.f32.gmra.mxu0 %v404
    %v541 = vpop.f32.mrf.mxu0
    %v542 = vadd.f32 0.0, %v541
    %543 = vdwg.mxu0
    %544 = vmatpush.msra.mxu0 0.0
    %545 = vmatpush.msra.mxu0 0.0
    %546 = vmatpush.msra.mxu0 0.0
    %547 = vmatpush.msra.mxu0 0.0
    %548 = vmatpush.msra.mxu0 0.0
    %549 = vmatpush.msra.mxu0 0.0
    %550 = vmatpush.msra.mxu0 0.0
    %551 = vmatpush.msra.mxu0 0.0
    %552 = vmatpush.msra.mxu0 %v397
    %553 = vmatpush.msra.mxu0 %v389
    %554 = vmatpush.msra.mxu0 %v381
    %555 = vmatpush.msra.mxu0 %v373
    %556 = vmatpush.msra.mxu0 %v365
    %557 = vmatpush.msra.mxu0 %v357
    %558 = vmatpush.msra.mxu0 %v349
    %559 = vmatpush.msra.mxu0 %v341
    %560 = vmatmul.f32.gmra.mxu0 %v401
    %v561 = vpop.f32.mrf.mxu0
    %v562 = vadd.f32 0.0, %v561
    %563 = vmatmul.f32.gmra.mxu0 %v404
    %v564 = vpop.f32.mrf.mxu0
    %v565 = vadd.f32 0.0, %v564
    %566 = vdwg.mxu0
    %567 = vmatpush.msra.mxu0 0.0
    %568 = vmatpush.msra.mxu0 0.0
    %569 = vmatpush.msra.mxu0 0.0
    %570 = vmatpush.msra.mxu0 0.0
    %571 = vmatpush.msra.mxu0 0.0
    %572 = vmatpush.msra.mxu0 0.0
    %573 = vmatpush.msra.mxu0 0.0
    %574 = vmatpush.msra.mxu0 0.0
    %575 = vmatpush.msra.mxu0 %v398
    %576 = vmatpush.msra.mxu0 %v390
    %577 = vmatpush.msra.mxu0 %v382
    %578 = vmatpush.msra.mxu0 %v374
    %579 = vmatpush.msra.mxu0 %v366
    %580 = vmatpush.msra.mxu0 %v358
    %581 = vmatpush.msra.mxu0 %v350
    %582 = vmatpush.msra.mxu0 %v342
    %583 = vmatmul.f32.gmra.mxu0 %v401
    %v584 = vpop.f32.mrf.mxu0
    %v585 = vadd.f32 0.0, %v584
    %586 = vmatmul.f32.gmra.mxu0 %v404
    %v587 = vpop.f32.mrf.mxu0
    %v588 = vadd.f32 0.0, %v587
    %589 = vdwg.mxu0
    %v591 = vsel %vm399, %v265, 0
    %v594 = vsel %vm399, %v268, 0
    %596 = vmatpush.msra.mxu0 0.0
    %597 = vmatpush.msra.mxu0 0.0
    %598 = vmatpush.msra.mxu0 0.0
    %599 = vmatpush.msra.mxu0 0.0
    %600 = vmatpush.msra.mxu0 0.0
    %601 = vmatpush.msra.mxu0 0.0
    %602 = vmatpush.msra.mxu0 0.0
    %603 = vmatpush.msra.mxu0 0.0
    %604 = vmatpush.msra.mxu0 %v326
    %605 = vmatpush.msra.mxu0 %v318
    %606 = vmatpush.msra.mxu0 %v310
    %607 = vmatpush.msra.mxu0 %v302
    %608 = vmatpush.msra.mxu0 %v294
    %609 = vmatpush.msra.mxu0 %v286
    %610 = vmatpush.msra.mxu0 %v278
    %611 = vmatpush.msra.mxu0 %v270
    %612 = vmatmul.f32.gmra.mxu0 %v591
    %v613 = vpop.f32.mrf.mxu0
    %v614 = vadd.f32 %v424, %v613
    %615 = vmatmul.f32.gmra.mxu0 %v594
    %v616 = vpop.f32.mrf.mxu0
    %v617 = vadd.f32 %v427, %v616
    %618 = vdwg.mxu0
    %619 = vmatpush.msra.mxu0 0.0
    %620 = vmatpush.msra.mxu0 0.0
    %621 = vmatpush.msra.mxu0 0.0
    %622 = vmatpush.msra.mxu0 0.0
    %623 = vmatpush.msra.mxu0 0.0
    %624 = vmatpush.msra.mxu0 0.0
    %625 = vmatpush.msra.mxu0 0.0
    %626 = vmatpush.msra.mxu0 0.0
    %627 = vmatpush.msra.mxu0 %v327
    %628 = vmatpush.msra.mxu0 %v319
    %629 = vmatpush.msra.mxu0 %v311
    %630 = vmatpush.msra.mxu0 %v303
    %631 = vmatpush.msra.mxu0 %v295
    %632 = vmatpush.msra.mxu0 %v287
    %633 = vmatpush.msra.mxu0 %v279
    %634 = vmatpush.msra.mxu0 %v271
    %635 = vmatmul.f32.gmra.mxu0 %v591
    %v636 = vpop.f32.mrf.mxu0
    %v637 = vadd.f32 %v447, %v636
    %638 = vmatmul.f32.gmra.mxu0 %v594
    %v639 = vpop.f32.mrf.mxu0
    %v640 = vadd.f32 %v450, %v639
    %641 = vdwg.mxu0
    %642 = vmatpush.msra.mxu0 0.0
    %643 = vmatpush.msra.mxu0 0.0
    %644 = vmatpush.msra.mxu0 0.0
    %645 = vmatpush.msra.mxu0 0.0
    %646 = vmatpush.msra.mxu0 0.0
    %647 = vmatpush.msra.mxu0 0.0
    %648 = vmatpush.msra.mxu0 0.0
    %649 = vmatpush.msra.mxu0 0.0
    %650 = vmatpush.msra.mxu0 %v328
    %651 = vmatpush.msra.mxu0 %v320
    %652 = vmatpush.msra.mxu0 %v312
    %653 = vmatpush.msra.mxu0 %v304
    %654 = vmatpush.msra.mxu0 %v296
    %655 = vmatpush.msra.mxu0 %v288
    %656 = vmatpush.msra.mxu0 %v280
    %657 = vmatpush.msra.mxu0 %v272
    %658 = vmatmul.f32.gmra.mxu0 %v591
    %v659 = vpop.f32.mrf.mxu0
    %v660 = vadd.f32 %v470, %v659
    %661 = vmatmul.f32.gmra.mxu0 %v594
    %v662 = vpop.f32.mrf.mxu0
    %v663 = vadd.f32 %v473, %v662
    %664 = vdwg.mxu0
    %665 = vmatpush.msra.mxu0 0.0
    %666 = vmatpush.msra.mxu0 0.0
    %667 = vmatpush.msra.mxu0 0.0
    %668 = vmatpush.msra.mxu0 0.0
    %669 = vmatpush.msra.mxu0 0.0
    %670 = vmatpush.msra.mxu0 0.0
    %671 = vmatpush.msra.mxu0 0.0
    %672 = vmatpush.msra.mxu0 0.0
    %673 = vmatpush.msra.mxu0 %v329
    %674 = vmatpush.msra.mxu0 %v321
    %675 = vmatpush.msra.mxu0 %v313
    %676 = vmatpush.msra.mxu0 %v305
    %677 = vmatpush.msra.mxu0 %v297
    %678 = vmatpush.msra.mxu0 %v289
    %679 = vmatpush.msra.mxu0 %v281
    %680 = vmatpush.msra.mxu0 %v273
    %681 = vmatmul.f32.gmra.mxu0 %v591
    %v682 = vpop.f32.mrf.mxu0
    %v683 = vadd.f32 %v493, %v682
    %684 = vmatmul.f32.gmra.mxu0 %v594
    %v685 = vpop.f32.mrf.mxu0
    %v686 = vadd.f32 %v496, %v685
    %687 = vdwg.mxu0
    %688 = vmatpush.msra.mxu0 0.0
    %689 = vmatpush.msra.mxu0 0.0
    %690 = vmatpush.msra.mxu0 0.0
    %691 = vmatpush.msra.mxu0 0.0
    %692 = vmatpush.msra.mxu0 0.0
    %693 = vmatpush.msra.mxu0 0.0
    %694 = vmatpush.msra.mxu0 0.0
    %695 = vmatpush.msra.mxu0 0.0
    %696 = vmatpush.msra.mxu0 %v330
    %697 = vmatpush.msra.mxu0 %v322
    %698 = vmatpush.msra.mxu0 %v314
    %699 = vmatpush.msra.mxu0 %v306
    %700 = vmatpush.msra.mxu0 %v298
    %701 = vmatpush.msra.mxu0 %v290
    %702 = vmatpush.msra.mxu0 %v282
    %703 = vmatpush.msra.mxu0 %v274
    %704 = vmatmul.f32.gmra.mxu0 %v591
    %v705 = vpop.f32.mrf.mxu0
    %v706 = vadd.f32 %v516, %v705
    %707 = vmatmul.f32.gmra.mxu0 %v594
    %v708 = vpop.f32.mrf.mxu0
    %v709 = vadd.f32 %v519, %v708
    %710 = vdwg.mxu0
    %711 = vmatpush.msra.mxu0 0.0
    %712 = vmatpush.msra.mxu0 0.0
    %713 = vmatpush.msra.mxu0 0.0
    %714 = vmatpush.msra.mxu0 0.0
    %715 = vmatpush.msra.mxu0 0.0
    %716 = vmatpush.msra.mxu0 0.0
    %717 = vmatpush.msra.mxu0 0.0
    %718 = vmatpush.msra.mxu0 0.0
    %719 = vmatpush.msra.mxu0 %v331
    %720 = vmatpush.msra.mxu0 %v323
    %721 = vmatpush.msra.mxu0 %v315
    %722 = vmatpush.msra.mxu0 %v307
    %723 = vmatpush.msra.mxu0 %v299
    %724 = vmatpush.msra.mxu0 %v291
    %725 = vmatpush.msra.mxu0 %v283
    %726 = vmatpush.msra.mxu0 %v275
    %727 = vmatmul.f32.gmra.mxu0 %v591
    %v728 = vpop.f32.mrf.mxu0
    %v729 = vadd.f32 %v539, %v728
    %730 = vmatmul.f32.gmra.mxu0 %v594
    %v731 = vpop.f32.mrf.mxu0
    %v732 = vadd.f32 %v542, %v731
    %733 = vdwg.mxu0
    %734 = vmatpush.msra.mxu0 0.0
    %735 = vmatpush.msra.mxu0 0.0
    %736 = vmatpush.msra.mxu0 0.0
    %737 = vmatpush.msra.mxu0 0.0
    %738 = vmatpush.msra.mxu0 0.0
    %739 = vmatpush.msra.mxu0 0.0
    %740 = vmatpush.msra.mxu0 0.0
    %741 = vmatpush.msra.mxu0 0.0
    %742 = vmatpush.msra.mxu0 %v332
    %743 = vmatpush.msra.mxu0 %v324
    %744 = vmatpush.msra.mxu0 %v316
    %745 = vmatpush.msra.mxu0 %v308
    %746 = vmatpush.msra.mxu0 %v300
    %747 = vmatpush.msra.mxu0 %v292
    %748 = vmatpush.msra.mxu0 %v284
    %749 = vmatpush.msra.mxu0 %v276
    %750 = vmatmul.f32.gmra.mxu0 %v591
    %v751 = vpop.f32.mrf.mxu0
    %v752 = vadd.f32 %v562, %v751
    %753 = vmatmul.f32.gmra.mxu0 %v594
    %v754 = vpop.f32.mrf.mxu0
    %v755 = vadd.f32 %v565, %v754
    %756 = vdwg.mxu0
    %757 = vmatpush.msra.mxu0 0.0
    %758 = vmatpush.msra.mxu0 0.0
    %759 = vmatpush.msra.mxu0 0.0
    %760 = vmatpush.msra.mxu0 0.0
    %761 = vmatpush.msra.mxu0 0.0
    %762 = vmatpush.msra.mxu0 0.0
    %763 = vmatpush.msra.mxu0 0.0
    %764 = vmatpush.msra.mxu0 0.0
    %765 = vmatpush.msra.mxu0 %v333
    %766 = vmatpush.msra.mxu0 %v325
    %767 = vmatpush.msra.mxu0 %v317
    %768 = vmatpush.msra.mxu0 %v309
    %769 = vmatpush.msra.mxu0 %v301
    %770 = vmatpush.msra.mxu0 %v293
    %771 = vmatpush.msra.mxu0 %v285
    %772 = vmatpush.msra.mxu0 %v277
    %773 = vmatmul.f32.gmra.mxu0 %v591
    %v774 = vpop.f32.mrf.mxu0
    %v775 = vadd.f32 %v585, %v774
    %776 = vmatmul.f32.gmra.mxu0 %v594
    %v777 = vpop.f32.mrf.mxu0
    %v778 = vadd.f32 %v588, %v777
    %779 = vdwg.mxu0
    %780 = vmatpush.msra.mxu0 0.0
    %781 = vmatpush.msra.mxu0 0.0
    %782 = vmatpush.msra.mxu0 0.0
    %783 = vmatpush.msra.mxu0 0.0
    %784 = vmatpush.msra.mxu0 0.0
    %785 = vmatpush.msra.mxu0 0.0
    %786 = vmatpush.msra.mxu0 0.0
    %787 = vmatpush.msra.mxu0 0.0
    %788 = vmatpush.msra.mxu0 0.0
    %789 = vmatpush.msra.mxu0 0.0
    %790 = vmatpush.msra.mxu0 0.0
    %791 = vmatpush.msra.mxu0 0.0
    %792 = vmatpush.msra.mxu0 0.0
    %793 = vmatpush.msra.mxu0 0.0
    %794 = vmatpush.msra.mxu0 %v245
    %795 = vmatpush.msra.mxu0 %v244
    %796 = vmatmul.f32.gmra.mxu0 %v168
    %v797 = vpop.f32.mrf.mxu0
    %v798 = vadd.f32 0.0, %v797
    %799 = vmatmul.f32.gmra.mxu0 %v171
    %v800 = vpop.f32.mrf.mxu0
    %v801 = vadd.f32 0.0, %v800
    %802 = vdwg.mxu0
    %s803 = scalar_lea.vmem [#allocation7], 1024
    %v804 = vld [vmem:[%s803] sm:$0xff]
    %v805 = vld [vmem:[%s803 + $0x8] sm:$0xff]
    %v806 = vld [vmem:[%s803 + $0x10] sm:$0xff]
    %v807 = vld [vmem:[%s803 + $0x18] sm:$0xff]
    %v808 = vld [vmem:[%s803 + $0x20] sm:$0xff]
    %v809 = vld [vmem:[%s803 + $0x28] sm:$0xff]
    %v810 = vld [vmem:[%s803 + $0x30] sm:$0xff]
    %v811 = vld [vmem:[%s803 + $0x38] sm:$0xff]
    %v812 = vld [vmem:[%s803 + $0x40] sm:$0xff]
    %v813 = vld [vmem:[%s803 + $0x48] sm:$0xff]
    %v814 = vld [vmem:[%s803 + $0x50] sm:$0xff]
    %v815 = vld [vmem:[%s803 + $0x58] sm:$0xff]
    %v816 = vld [vmem:[%s803 + $0x60] sm:$0xff]
    %v817 = vld [vmem:[%s803 + $0x68] sm:$0xff]
    %v818 = vld [vmem:[%s803 + $0x70] sm:$0xff]
    %v819 = vld [vmem:[%s803 + $0x78] sm:$0xff]
    %v820 = vld [vmem:[%s803 + $0x80] sm:$0xff]
    %v821 = vld [vmem:[%s803 + $0x88] sm:$0xff]
    %v822 = vld [vmem:[%s803 + $0x90] sm:$0xff]
    %v823 = vld [vmem:[%s803 + $0x98] sm:$0xff]
    %v824 = vld [vmem:[%s803 + $0xa0] sm:$0xff]
    %v825 = vld [vmem:[%s803 + $0xa8] sm:$0xff]
    %v826 = vld [vmem:[%s803 + $0xb0] sm:$0xff]
    %v827 = vld [vmem:[%s803 + $0xb8] sm:$0xff]
    %v828 = vld [vmem:[%s803 + $0xc0] sm:$0xff]
    %v829 = vld [vmem:[%s803 + $0xc8] sm:$0xff]
    %v830 = vld [vmem:[%s803 + $0xd0] sm:$0xff]
    %v831 = vld [vmem:[%s803 + $0xd8] sm:$0xff]
    %v832 = vld [vmem:[%s803 + $0xe0] sm:$0xff]
    %v833 = vld [vmem:[%s803 + $0xe8] sm:$0xff]
    %v834 = vld [vmem:[%s803 + $0xf0] sm:$0xff]
    %v835 = vld [vmem:[%s803 + $0xf8] sm:$0xff]
    %v836 = vld [vmem:[%s803 + $0x100] sm:$0xff]
    %v837 = vld [vmem:[%s803 + $0x108] sm:$0xff]
    %v838 = vld [vmem:[%s803 + $0x110] sm:$0xff]
    %v839 = vld [vmem:[%s803 + $0x118] sm:$0xff]
    %v840 = vld [vmem:[%s803 + $0x120] sm:$0xff]
    %v841 = vld [vmem:[%s803 + $0x128] sm:$0xff]
    %v842 = vld [vmem:[%s803 + $0x130] sm:$0xff]
    %v843 = vld [vmem:[%s803 + $0x138] sm:$0xff]
    %v844 = vld [vmem:[%s803 + $0x140] sm:$0xff]
    %v845 = vld [vmem:[%s803 + $0x148] sm:$0xff]
    %v846 = vld [vmem:[%s803 + $0x150] sm:$0xff]
    %v847 = vld [vmem:[%s803 + $0x158] sm:$0xff]
    %v848 = vld [vmem:[%s803 + $0x160] sm:$0xff]
    %v849 = vld [vmem:[%s803 + $0x168] sm:$0xff]
    %v850 = vld [vmem:[%s803 + $0x170] sm:$0xff]
    %v851 = vld [vmem:[%s803 + $0x178] sm:$0xff]
    %v852 = vld [vmem:[%s803 + $0x180] sm:$0xff]
    %v853 = vld [vmem:[%s803 + $0x188] sm:$0xff]
    %v854 = vld [vmem:[%s803 + $0x190] sm:$0xff]
    %v855 = vld [vmem:[%s803 + $0x198] sm:$0xff]
    %v856 = vld [vmem:[%s803 + $0x1a0] sm:$0xff]
    %v857 = vld [vmem:[%s803 + $0x1a8] sm:$0xff]
    %v858 = vld [vmem:[%s803 + $0x1b0] sm:$0xff]
    %v859 = vld [vmem:[%s803 + $0x1b8] sm:$0xff]
    %v860 = vld [vmem:[%s803 + $0x1c0] sm:$0xff]
    %v861 = vld [vmem:[%s803 + $0x1c8] sm:$0xff]
    %v862 = vld [vmem:[%s803 + $0x1d0] sm:$0xff]
    %v863 = vld [vmem:[%s803 + $0x1d8] sm:$0xff]
    %v864 = vld [vmem:[%s803 + $0x1e0] sm:$0xff]
    %v865 = vld [vmem:[%s803 + $0x1e8] sm:$0xff]
    %v866 = vld [vmem:[%s803 + $0x1f0] sm:$0xff]
    %v867 = vld [vmem:[%s803 + $0x1f8] sm:$0xff]
    %v869 = vsel %vm399, %v798, 0
    %v872 = vsel %vm399, %v801, 0
    %874 = vmatpush.msra.mxu0 0.0
    %875 = vmatpush.msra.mxu0 0.0
    %876 = vmatpush.msra.mxu0 0.0
    %877 = vmatpush.msra.mxu0 0.0
    %878 = vmatpush.msra.mxu0 0.0
    %879 = vmatpush.msra.mxu0 0.0
    %880 = vmatpush.msra.mxu0 0.0
    %881 = vmatpush.msra.mxu0 0.0
    %882 = vmatpush.msra.mxu0 %v860
    %883 = vmatpush.msra.mxu0 %v852
    %884 = vmatpush.msra.mxu0 %v844
    %885 = vmatpush.msra.mxu0 %v836
    %886 = vmatpush.msra.mxu0 %v828
    %887 = vmatpush.msra.mxu0 %v820
    %888 = vmatpush.msra.mxu0 %v812
    %889 = vmatpush.msra.mxu0 %v804
    %890 = vmatmul.f32.gmra.mxu0 %v869
    %v891 = vpop.f32.mrf.mxu0
    %v892 = vadd.f32 0.0, %v891
    %893 = vmatmul.f32.gmra.mxu0 %v872
    %v894 = vpop.f32.mrf.mxu0
    %v895 = vadd.f32 0.0, %v894
    %896 = vdwg.mxu0
    %897 = vmatpush.msra.mxu0 0.0
    %898 = vmatpush.msra.mxu0 0.0
    %899 = vmatpush.msra.mxu0 0.0
    %900 = vmatpush.msra.mxu0 0.0
    %901 = vmatpush.msra.mxu0 0.0
    %902 = vmatpush.msra.mxu0 0.0
    %903 = vmatpush.msra.mxu0 0.0
    %904 = vmatpush.msra.mxu0 0.0
    %905 = vmatpush.msra.mxu0 %v861
    %906 = vmatpush.msra.mxu0 %v853
    %907 = vmatpush.msra.mxu0 %v845
    %908 = vmatpush.msra.mxu0 %v837
    %909 = vmatpush.msra.mxu0 %v829
    %910 = vmatpush.msra.mxu0 %v821
    %911 = vmatpush.msra.mxu0 %v813
    %912 = vmatpush.msra.mxu0 %v805
    %913 = vmatmul.f32.gmra.mxu0 %v869
    %v914 = vpop.f32.mrf.mxu0
    %v915 = vadd.f32 0.0, %v914
    %916 = vmatmul.f32.gmra.mxu0 %v872
    %v917 = vpop.f32.mrf.mxu0
    %v918 = vadd.f32 0.0, %v917
    %919 = vdwg.mxu0
    %920 = vmatpush.msra.mxu0 0.0
    %921 = vmatpush.msra.mxu0 0.0
    %922 = vmatpush.msra.mxu0 0.0
    %923 = vmatpush.msra.mxu0 0.0
    %924 = vmatpush.msra.mxu0 0.0
    %925 = vmatpush.msra.mxu0 0.0
    %926 = vmatpush.msra.mxu0 0.0
    %927 = vmatpush.msra.mxu0 0.0
    %928 = vmatpush.msra.mxu0 %v862
    %929 = vmatpush.msra.mxu0 %v854
    %930 = vmatpush.msra.mxu0 %v846
    %931 = vmatpush.msra.mxu0 %v838
    %932 = vmatpush.msra.mxu0 %v830
    %933 = vmatpush.msra.mxu0 %v822
    %934 = vmatpush.msra.mxu0 %v814
    %935 = vmatpush.msra.mxu0 %v806
    %936 = vmatmul.f32.gmra.mxu0 %v869
    %v937 = vpop.f32.mrf.mxu0
    %v938 = vadd.f32 0.0, %v937
    %939 = vmatmul.f32.gmra.mxu0 %v872
    %v940 = vpop.f32.mrf.mxu0
    %v941 = vadd.f32 0.0, %v940
    %942 = vdwg.mxu0
    %943 = vmatpush.msra.mxu0 0.0
    %944 = vmatpush.msra.mxu0 0.0
    %945 = vmatpush.msra.mxu0 0.0
    %946 = vmatpush.msra.mxu0 0.0
    %947 = vmatpush.msra.mxu0 0.0
    %948 = vmatpush.msra.mxu0 0.0
    %949 = vmatpush.msra.mxu0 0.0
    %950 = vmatpush.msra.mxu0 0.0
    %951 = vmatpush.msra.mxu0 %v863
    %952 = vmatpush.msra.mxu0 %v855
    %953 = vmatpush.msra.mxu0 %v847
    %954 = vmatpush.msra.mxu0 %v839
    %955 = vmatpush.msra.mxu0 %v831
    %956 = vmatpush.msra.mxu0 %v823
    %957 = vmatpush.msra.mxu0 %v815
    %958 = vmatpush.msra.mxu0 %v807
    %959 = vmatmul.f32.gmra.mxu0 %v869
    %v960 = vpop.f32.mrf.mxu0
    %v961 = vadd.f32 0.0, %v960
    %962 = vmatmul.f32.gmra.mxu0 %v872
    %v963 = vpop.f32.mrf.mxu0
    %v964 = vadd.f32 0.0, %v963
    %965 = vdwg.mxu0
    %966 = vmatpush.msra.mxu0 0.0
    %967 = vmatpush.msra.mxu0 0.0
    %968 = vmatpush.msra.mxu0 0.0
    %969 = vmatpush.msra.mxu0 0.0
    %970 = vmatpush.msra.mxu0 0.0
    %971 = vmatpush.msra.mxu0 0.0
    %972 = vmatpush.msra.mxu0 0.0
    %973 = vmatpush.msra.mxu0 0.0
    %974 = vmatpush.msra.mxu0 %v864
    %975 = vmatpush.msra.mxu0 %v856
    %976 = vmatpush.msra.mxu0 %v848
    %977 = vmatpush.msra.mxu0 %v840
    %978 = vmatpush.msra.mxu0 %v832
    %979 = vmatpush.msra.mxu0 %v824
    %980 = vmatpush.msra.mxu0 %v816
    %981 = vmatpush.msra.mxu0 %v808
    %982 = vmatmul.f32.gmra.mxu0 %v869
    %v983 = vpop.f32.mrf.mxu0
    %v984 = vadd.f32 0.0, %v983
    %985 = vmatmul.f32.gmra.mxu0 %v872
    %v986 = vpop.f32.mrf.mxu0
    %v987 = vadd.f32 0.0, %v986
    %988 = vdwg.mxu0
    %989 = vmatpush.msra.mxu0 0.0
    %990 = vmatpush.msra.mxu0 0.0
    %991 = vmatpush.msra.mxu0 0.0
    %992 = vmatpush.msra.mxu0 0.0
    %993 = vmatpush.msra.mxu0 0.0
    %994 = vmatpush.msra.mxu0 0.0
    %995 = vmatpush.msra.mxu0 0.0
    %996 = vmatpush.msra.mxu0 0.0
    %997 = vmatpush.msra.mxu0 %v865
    %998 = vmatpush.msra.mxu0 %v857
    %999 = vmatpush.msra.mxu0 %v849
    %1000 = vmatpush.msra.mxu0 %v841
    %1001 = vmatpush.msra.mxu0 %v833
    %1002 = vmatpush.msra.mxu0 %v825
    %1003 = vmatpush.msra.mxu0 %v817
    %1004 = vmatpush.msra.mxu0 %v809
    %1005 = vmatmul.f32.gmra.mxu0 %v869
    %v1006 = vpop.f32.mrf.mxu0
    %v1007 = vadd.f32 0.0, %v1006
    %1008 = vmatmul.f32.gmra.mxu0 %v872
    %v1009 = vpop.f32.mrf.mxu0
    %v1010 = vadd.f32 0.0, %v1009
    %1011 = vdwg.mxu0
    %1012 = vmatpush.msra.mxu0 0.0
    %1013 = vmatpush.msra.mxu0 0.0
    %1014 = vmatpush.msra.mxu0 0.0
    %1015 = vmatpush.msra.mxu0 0.0
    %1016 = vmatpush.msra.mxu0 0.0
    %1017 = vmatpush.msra.mxu0 0.0
    %1018 = vmatpush.msra.mxu0 0.0
    %1019 = vmatpush.msra.mxu0 0.0
    %1020 = vmatpush.msra.mxu0 %v866
    %1021 = vmatpush.msra.mxu0 %v858
    %1022 = vmatpush.msra.mxu0 %v850
    %1023 = vmatpush.msra.mxu0 %v842
    %1024 = vmatpush.msra.mxu0 %v834
    %1025 = vmatpush.msra.mxu0 %v826
    %1026 = vmatpush.msra.mxu0 %v818
    %1027 = vmatpush.msra.mxu0 %v810
    %1028 = vmatmul.f32.gmra.mxu0 %v869
    %v1029 = vpop.f32.mrf.mxu0
    %v1030 = vadd.f32 0.0, %v1029
    %1031 = vmatmul.f32.gmra.mxu0 %v872
    %v1032 = vpop.f32.mrf.mxu0
    %v1033 = vadd.f32 0.0, %v1032
    %1034 = vdwg.mxu0
    %1035 = vmatpush.msra.mxu0 0.0
    %1036 = vmatpush.msra.mxu0 0.0
    %1037 = vmatpush.msra.mxu0 0.0
    %1038 = vmatpush.msra.mxu0 0.0
    %1039 = vmatpush.msra.mxu0 0.0
    %1040 = vmatpush.msra.mxu0 0.0
    %1041 = vmatpush.msra.mxu0 0.0
    %1042 = vmatpush.msra.mxu0 0.0
    %1043 = vmatpush.msra.mxu0 %v867
    %1044 = vmatpush.msra.mxu0 %v859
    %1045 = vmatpush.msra.mxu0 %v851
    %1046 = vmatpush.msra.mxu0 %v843
    %1047 = vmatpush.msra.mxu0 %v835
    %1048 = vmatpush.msra.mxu0 %v827
    %1049 = vmatpush.msra.mxu0 %v819
    %1050 = vmatpush.msra.mxu0 %v811
    %1051 = vmatmul.f32.gmra.mxu0 %v869
    %v1052 = vpop.f32.mrf.mxu0
    %v1053 = vadd.f32 0.0, %v1052
    %1054 = vmatmul.f32.gmra.mxu0 %v872
    %v1055 = vpop.f32.mrf.mxu0
    %v1056 = vadd.f32 0.0, %v1055
    %1057 = vdwg.mxu0
    %v1058 = vadd.f32 %v614, %v892
    %v1059 = vadd.f32 %v637, %v915
    %v1060 = vadd.f32 %v660, %v938
    %v1061 = vadd.f32 %v683, %v961
    %v1062 = vadd.f32 %v706, %v984
    %v1063 = vadd.f32 %v729, %v1007
    %v1064 = vadd.f32 %v752, %v1030
    %v1065 = vadd.f32 %v775, %v1053
    %v1066 = vadd.f32 %v617, %v895
    %v1067 = vadd.f32 %v640, %v918
    %v1068 = vadd.f32 %v663, %v941
    %v1069 = vadd.f32 %v686, %v964
    %v1070 = vadd.f32 %v709, %v987
    %v1071 = vadd.f32 %v732, %v1010
    %v1072 = vadd.f32 %v755, %v1033
    %v1073 = vadd.f32 %v778, %v1056
    %v1075 = vperm.slane %v246, 0
    %1076 = vset.pattern.permute.xlu0 0
    %1077 = vperm.xlu0 %1076, %v1075
    %v1078 = vpop.permute.xlu0 %1077
    %v1080 = vadd.f32 %v1058, %v1078
    %v1081 = vadd.f32 %v1059, %v1078
    %v1082 = vadd.f32 %v1060, %v1078
    %v1083 = vadd.f32 %v1061, %v1078
    %v1084 = vadd.f32 %v1062, %v1078
    %v1085 = vadd.f32 %v1063, %v1078
    %v1086 = vadd.f32 %v1064, %v1078
    %v1087 = vadd.f32 %v1065, %v1078
    %v1088 = vadd.f32 %v1066, %v1078
    %v1089 = vadd.f32 %v1067, %v1078
    %v1090 = vadd.f32 %v1068, %v1078
    %v1091 = vadd.f32 %v1069, %v1078
    %v1092 = vadd.f32 %v1070, %v1078
    %v1093 = vadd.f32 %v1071, %v1078
    %v1094 = vadd.f32 %v1072, %v1078
    %v1095 = vadd.f32 %v1073, %v1078
    %vm1096 = vcmp.ge.f32.partialorder %v1080, 0.0
    %vm1097 = vcmp.ge.f32.partialorder %v1081, 0.0
    %vm1098 = vcmp.ge.f32.partialorder %v1082, 0.0
    %vm1099 = vcmp.ge.f32.partialorder %v1083, 0.0
    %vm1100 = vcmp.ge.f32.partialorder %v1084, 0.0
    %vm1101 = vcmp.ge.f32.partialorder %v1085, 0.0
    %vm1102 = vcmp.ge.f32.partialorder %v1086, 0.0
    %vm1103 = vcmp.ge.f32.partialorder %v1087, 0.0
    %vm1104 = vcmp.ge.f32.partialorder %v1088, 0.0
    %vm1105 = vcmp.ge.f32.partialorder %v1089, 0.0
    %vm1106 = vcmp.ge.f32.partialorder %v1090, 0.0
    %vm1107 = vcmp.ge.f32.partialorder %v1091, 0.0
    %vm1108 = vcmp.ge.f32.partialorder %v1092, 0.0
    %vm1109 = vcmp.ge.f32.partialorder %v1093, 0.0
    %vm1110 = vcmp.ge.f32.partialorder %v1094, 0.0
    %vm1111 = vcmp.ge.f32.partialorder %v1095, 0.0
    %v1112 = vmul.f32 %v1080, 0.4
    %v1113 = vmul.f32 %v1081, 0.4
    %v1114 = vmul.f32 %v1082, 0.4
    %v1115 = vmul.f32 %v1083, 0.4
    %v1116 = vmul.f32 %v1084, 0.4
    %v1117 = vmul.f32 %v1085, 0.4
    %v1118 = vmul.f32 %v1086, 0.4
    %v1119 = vmul.f32 %v1087, 0.4
    %v1120 = vmul.f32 %v1088, 0.4
    %v1121 = vmul.f32 %v1089, 0.4
    %v1122 = vmul.f32 %v1090, 0.4
    %v1123 = vmul.f32 %v1091, 0.4
    %v1124 = vmul.f32 %v1092, 0.4
    %v1125 = vmul.f32 %v1093, 0.4
    %v1126 = vmul.f32 %v1094, 0.4
    %v1127 = vmul.f32 %v1095, 0.4
    %v1128 = vsel %vm1096, %v1080, %v1112
    %v1129 = vsel %vm1097, %v1081, %v1113
    %v1130 = vsel %vm1098, %v1082, %v1114
    %v1131 = vsel %vm1099, %v1083, %v1115
    %v1132 = vsel %vm1100, %v1084, %v1116
    %v1133 = vsel %vm1101, %v1085, %v1117
    %v1134 = vsel %vm1102, %v1086, %v1118
    %v1135 = vsel %vm1103, %v1087, %v1119
    %v1136 = vsel %vm1104, %v1088, %v1120
    %v1137 = vsel %vm1105, %v1089, %v1121
    %v1138 = vsel %vm1106, %v1090, %v1122
    %v1139 = vsel %vm1107, %v1091, %v1123
    %v1140 = vsel %vm1108, %v1092, %v1124
    %v1141 = vsel %vm1109, %v1093, %v1125
    %v1142 = vsel %vm1110, %v1094, %v1126
    %v1143 = vsel %vm1111, %v1095, %v1127
    %1144 = vst [vmem:[#allocation9] sm:$0xff] %v1128
    %1145 = vst [vmem:[#allocation9 + $0x8] sm:$0xff] %v1129
    %1146 = vst [vmem:[#allocation9 + $0x10] sm:$0xff] %v1130
    %1147 = vst [vmem:[#allocation9 + $0x18] sm:$0xff] %v1131
    %1148 = vst [vmem:[#allocation9 + $0x20] sm:$0xff] %v1132
    %1149 = vst [vmem:[#allocation9 + $0x28] sm:$0xff] %v1133
    %1150 = vst [vmem:[#allocation9 + $0x30] sm:$0xff] %v1134
    %1151 = vst [vmem:[#allocation9 + $0x38] sm:$0xff] %v1135
    %1152 = vst [vmem:[#allocation9 + $0x40] sm:$0xff] %v1136
    %1153 = vst [vmem:[#allocation9 + $0x48] sm:$0xff] %v1137
    %1154 = vst [vmem:[#allocation9 + $0x50] sm:$0xff] %v1138
    %1155 = vst [vmem:[#allocation9 + $0x58] sm:$0xff] %v1139
    %1156 = vst [vmem:[#allocation9 + $0x60] sm:$0xff] %v1140
    %1157 = vst [vmem:[#allocation9 + $0x68] sm:$0xff] %v1141
    %1158 = vst [vmem:[#allocation9 + $0x70] sm:$0xff] %v1142
    %1159 = vst [vmem:[#allocation9 + $0x78] sm:$0xff] %v1143
    // Predicated region
    $region34: #{tpu_custom_call.1} parent=1 // pred_check
      _
    $region35: #{tpu_custom_call.1} parent=1 // pred_check_branch
      %1161 = sbr.rel (0) target = $region37
    $region36: #{tpu_custom_call.1} parent=1 // pred_region
      %1163 = vsyncadd [#allocation6], 0
      %s1164 = sshll.u32 [#allocation9], 4
      %s1165 = int_to_ptr.vmem [resolvable:$true] %s1164
      %s1166 = sshll.u32 %s6, 4
      %s1167 = int_to_ptr.hbm [resolvable:$true] %s1166
      %1172 = dma.vmem_to_hbm [thread:$0]  %s1165, 2048, %s1167, [#allocation6], 1024, 1024, 64
    $region37: #{tpu_custom_call.1} parent=1 // pred_fallthru
      _
    // Predicated region
    $region38: #{tpu_custom_call.1} parent=1 // pred_check
      _
    $region39: #{tpu_custom_call.1} parent=1 // pred_check_branch
      %1174 = sbr.rel (0) target = $region41
    $region40: #{tpu_custom_call.1} parent=1 // pred_region
      %1176 = dma.done [#allocation6], 2048
    $region41: #{tpu_custom_call.1} parent=1 // pred_fallthru
      _
    %1177 = vsyncpa [#allocation5], 1
    %1178 = vsyncpa [#allocation8], 1
    %1179 = vsyncpa [#allocation6], 1

</llo_original>
